<compile_context>
chip_gen: v7x
topology: tpu7x:2x2x1
jax: 0.10.0
libtpu: 0.0.40
codegen_flags: <defaults>
</compile_context>

<pallas_src>
import jax
import jax.numpy as jnp
from jax.experimental import pallas as pl
from jax.experimental.pallas import tpu as pltpu


LANE_WIDTH = 1024  # lane-dense last dim (large multiple of 128)


# ---------------------------------------------------------------------------
# Kernel: complex ReLU  (mask = 1.0 * (real >= 0); out = mask*real, mask*imag)
# ---------------------------------------------------------------------------
def _complex_relu_kernel(real_ref, imag_ref, out_r_ref, out_i_ref):
    r = real_ref[...]                       # (TM, LANE_WIDTH)
    im = imag_ref[...]                      # (TM, LANE_WIDTH)
    # Keep exact reference semantics (mask * x); jnp.where would change NaN
    # behaviour in masked-out positions and this kernel is HBM-bound anyway.
    mask = (r >= 0).astype(r.dtype)
    out_r_ref[...] = mask * r
    out_i_ref[...] = mask * im


# ---------------------------------------------------------------------------
# Tiling plan
# ---------------------------------------------------------------------------
def _round_up(x, m):
    return ((x + m - 1) // m) * m


def _vmem_capacity_bytes():
    """Best-effort per-core VMEM capacity query; conservative (v7x) fallback."""
    try:
        info = pltpu.get_tpu_info()
        for name in ("vmem_capacity_bytes", "vmem_bytes"):
            cap = getattr(info, name, None)
            if cap:
                return int(cap)
    except Exception:
        pass
    return 64 * 1024 * 1024  # v7x per-TensorCore VMEM (smallest across gens)


def _tile_plan(rows, itemsize):
    """Pick a sublane-aligned row tile from a per-generation VMEM budget."""
    cap = _vmem_capacity_bytes()
    # Working set = 2 inputs + 2 outputs, each double-buffered = 8 live tiles.
    working_set = min(cap // 2, 32 * 1024 * 1024)      # <=32 MiB even on 128 MiB parts
    sub = max(8, 32 // itemsize)                       # 8 (f32), 16 (bf16), 32 (int8)
    bytes_per_row_ws = 8 * LANE_WIDTH * itemsize
    tm = working_set // bytes_per_row_ws
    tm = max(sub, (tm // sub) * sub)
    # Never tile larger than the (sublane-rounded) data itself.
    tm = min(tm, _round_up(rows, sub))
    if rows > sub:
        # Guarantee >= 2 grid steps so the "parallel" axis shards across the
        # two TensorCores on v7x and the pipeline has steps to overlap.
        tm = min(tm, _round_up(pl.cdiv(rows, 2), sub))
    tm = max(sub, tm)
    vmem_limit = min(cap * 3 // 4, 64 * 1024 * 1024)
    return tm, vmem_limit


# ---------------------------------------------------------------------------
# Wrapper
# ---------------------------------------------------------------------------
def complex_relu_pallas(real, imag):
    """Fused complex ReLU. Accepts any shape (purely elementwise)."""
    assert real.shape == imag.shape, (real.shape, imag.shape)
    assert real.dtype == imag.dtype, (real.dtype, imag.dtype)
    orig_shape = real.shape
    dtype = real.dtype
    itemsize = jnp.dtype(dtype).itemsize
    total = int(real.size)

    # Elementwise op: flatten both tensors to a lane-dense 2D slab so stores
    # are unmasked regardless of the original feature width, then pad rows up
    # to a tile multiple so tiling/pipelining/dual-core sharding always apply.
    rows = pl.cdiv(total, LANE_WIDTH)
    tm, vmem_limit = _tile_plan(rows, itemsize)
    padded_rows = _round_up(max(rows, tm), tm)
    padded_total = padded_rows * LANE_WIDTH

    real_flat = real.reshape(-1)
    imag_flat = imag.reshape(-1)
    pad = padded_total - total
    if pad:
        real_flat = jnp.pad(real_flat, (0, pad))
        imag_flat = jnp.pad(imag_flat, (0, pad))
    real2 = real_flat.reshape(padded_rows, LANE_WIDTH)
    imag2 = imag_flat.reshape(padded_rows, LANE_WIDTH)

    grid = (padded_rows // tm,)
    spec = pl.BlockSpec((tm, LANE_WIDTH), lambda i: (i, 0))

    out_r, out_i = pl.pallas_call(
        _complex_relu_kernel,
        grid=grid,
        in_specs=[spec, spec],
        out_specs=(spec, spec),
        out_shape=(jax.ShapeDtypeStruct((padded_rows, LANE_WIDTH), dtype),
                   jax.ShapeDtypeStruct((padded_rows, LANE_WIDTH), dtype)),
        compiler_params=pltpu.CompilerParams(
            dimension_semantics=("parallel",),      # megacore sharding on v7x
            vmem_limit_bytes=vmem_limit),
    )(real2, imag2)

    out_r = out_r.reshape(-1)[:total].reshape(orig_shape)
    out_i = out_i.reshape(-1)[:total].reshape(orig_shape)
    return out_r, out_i


# ---------------------------------------------------------------------------
# Demo / self-check
# ---------------------------------------------------------------------------
if __name__ == "__main__":
    key = jax.random.PRNGKey(0)
    kr, ki, kr2, ki2 = jax.random.split(key, 4)

    # Main case: small node-feature matrix (N, F).
    N, F = 256, 64
    real = jax.random.normal(kr, (N, F), jnp.float32)
    imag = jax.random.normal(ki, (N, F), jnp.float32)

    out_r, out_i = jax.block_until_ready(complex_relu_pallas(real, imag))

    mask = (real >= 0).astype(jnp.float32)
    assert out_r.shape == (N, F) and out_i.shape == (N, F)
    assert bool(jnp.all(out_r == mask * real))
    assert bool(jnp.all(out_i == mask * imag))

    # Ragged / narrow-feature shape exercises the pad-to-lane-dense path.
    real_s = jax.random.normal(kr2, (20, 48), jnp.float32)
    imag_s = jax.random.normal(ki2, (20, 48), jnp.float32)
    or_s, oi_s = jax.block_until_ready(complex_relu_pallas(real_s, imag_s))
    mask_s = (real_s >= 0).astype(jnp.float32)
    assert or_s.shape == (20, 48) and oi_s.shape == (20, 48)
    assert bool(jnp.all(or_s == mask_s * real_s))
    assert bool(jnp.all(oi_s == mask_s * imag_s))

    print("KERNEL_OK")
</pallas_src>

<mosaic_0001>
module attributes {stable_mosaic.version = 11 : i64} {
  func.func @_complex_relu_kernel(%arg0: i32, %arg1: memref<8x1024xf32, #tpu.memory_space<vmem>>, %arg2: memref<8x1024xf32, #tpu.memory_space<vmem>>, %arg3: memref<8x1024xf32, #tpu.memory_space<vmem>>, %arg4: memref<8x1024xf32, #tpu.memory_space<vmem>>) attributes {dimension_semantics = [#tpu.dimension_semantics<parallel>], iteration_bounds = array<i64: 2>, scalar_prefetch = 0 : i64, scratch_operands = 0 : i64, tpu.core_type = #tpu.core_type<tc>, window_params = [{transform_indices = @transform_0, window_bounds = array<i64: 8, 1024>}, {transform_indices = @transform_1, window_bounds = array<i64: 8, 1024>}, {transform_indices = @transform_2, window_bounds = array<i64: 8, 1024>}, {transform_indices = @transform_3, window_bounds = array<i64: 8, 1024>}]} {
    %c0 = arith.constant 0 : index
    %c0_0 = arith.constant 0 : index
    %0 = vector.load %arg1[%c0, %c0_0] : memref<8x1024xf32, #tpu.memory_space<vmem>>, vector<8x1024xf32>
    %c0_1 = arith.constant 0 : index
    %c0_2 = arith.constant 0 : index
    %1 = vector.load %arg2[%c0_1, %c0_2] : memref<8x1024xf32, #tpu.memory_space<vmem>>, vector<8x1024xf32>
    %cst = arith.constant 0.000000e+00 : f32
    %2 = vector.broadcast %cst : f32 to vector<8x1024xf32>
    %3 = arith.cmpf oge, %0, %2 : vector<8x1024xf32>
    %4 = arith.extui %3 : vector<8x1024xi1> to vector<8x1024xi32>
    %5 = arith.sitofp %4 : vector<8x1024xi32> to vector<8x1024xf32>
    %6 = arith.mulf %5, %0 : vector<8x1024xf32>
    %c0_3 = arith.constant 0 : index
    %c0_4 = arith.constant 0 : index
    %7 = vector.load %arg3[%c0_3, %c0_4] : memref<8x1024xf32, #tpu.memory_space<vmem>>, vector<8x1024xf32>
    tpu.vector_store %arg3[%c0_3, %c0_4], %6 {strides = array<i32>} : memref<8x1024xf32, #tpu.memory_space<vmem>>, vector<8x1024xf32>,
    %8 = arith.mulf %5, %1 : vector<8x1024xf32>
    %c0_5 = arith.constant 0 : index
    %c0_6 = arith.constant 0 : index
    %9 = vector.load %arg4[%c0_5, %c0_6] : memref<8x1024xf32, #tpu.memory_space<vmem>>, vector<8x1024xf32>
    tpu.vector_store %arg4[%c0_5, %c0_6], %8 {strides = array<i32>} : memref<8x1024xf32, #tpu.memory_space<vmem>>, vector<8x1024xf32>,
    return
  }
  func.func @transform_0(%arg0: i32) -> (i32, i32) {
    %c0_i32 = arith.constant 0 : i32
    %c0_i32_0 = arith.constant 0 : i32
    return %arg0, %c0_i32 : i32, i32
  }
  func.func @transform_1(%arg0: i32) -> (i32, i32) {
    %c0_i32 = arith.constant 0 : i32
    %c0_i32_0 = arith.constant 0 : i32
    return %arg0, %c0_i32 : i32, i32
  }
  func.func @transform_2(%arg0: i32) -> (i32, i32) {
    %c0_i32 = arith.constant 0 : i32
    %c0_i32_0 = arith.constant 0 : i32
    return %arg0, %c0_i32 : i32, i32
  }
  func.func @transform_3(%arg0: i32) -> (i32, i32) {
    %c0_i32 = arith.constant 0 : i32
    %c0_i32_0 = arith.constant 0 : i32
    return %arg0, %c0_i32 : i32, i32
  }
}

</mosaic_0001>

<llo_original>
// kernel: tpu_custom_call.1
$region0: #{tpu_custom_call.1}
  #allocation0 [shape = 'u32[]', space=smem, size = 0x4, offset = 0x4, fixed_abs, tag = 'smem constant byte address 0x4 - core index']
  #allocation1 [shape = 'u32[144,128]{1,0:T(1,128)}', space=vmem, size = 0x12000, scoped, tag = 'internal scratch']
  %s0 = inlined_call_operand.hbm [shape: f32[16,1024], index: 0, kind: input, shape index: {}]
  %s1 = inlined_call_operand.hbm [shape: f32[16,1024], index: 1, kind: input, shape index: {}]
  %s2 = inlined_call_operand.hbm [shape: f32[16,1024], index: 2, kind: output, shape index: {0}]
  %s3 = inlined_call_operand.hbm [shape: f32[16,1024], index: 3, kind: output, shape index: {1}]
  %4 = xla_tuple %s2, %s3
  %s5 = sld [smem:[#allocation0]]
  $region57: #{tpu_custom_call.1} parent=0
    _
  %s7 = ssub.s32 1, %s5
  %s8 = scalar_select 0, %s7, %s5
  $region1: #{tpu_custom_call.1} parent=0
    #allocation2 [shape = 'u8[65536]{0}', space=vmem, size = 0x10000, scoped, tag = 'input window, operand 0']
    #allocation3 [shape = 's32[2]{0}', space=sflag, size = 0x8, scoped, tag = 'scoped memory for tpu_custom_call.1']
    #allocation4 [shape = 's32[2]{0}', space=sflag, size = 0x8, scoped, tag = 'scoped memory for tpu_custom_call.1']
    #allocation5 [shape = 'u8[65536]{0}', space=vmem, size = 0x10000, scoped, tag = 'input window, operand 1']
    #allocation6 [shape = 's32[2]{0}', space=sflag, size = 0x8, scoped, tag = 'scoped memory for tpu_custom_call.1']
    #allocation7 [shape = 'u8[65536]{0}', space=vmem, size = 0x10000, scoped, tag = 'output window, operand 0']
    #allocation8 [shape = 'u8[65536]{0}', space=vmem, size = 0x10000, scoped, tag = 'output window, operand 1']
    #allocation9 [shape = 's32[2]{0}', space=sflag, size = 0x8, scoped, tag = 'scoped memory for tpu_custom_call.1']
    %9 = vsyncpa [#allocation3], 0
    %s10 = scalar_lea.sflag [#allocation3], 1
    %11 = vsyncpa %s10, 0
    %12 = vsyncpa [#allocation6], 0
    %s13 = scalar_lea.sflag [#allocation6], 1
    %14 = vsyncpa %s13, 0
    %15 = vsyncpa [#allocation4], 0
    %s16 = scalar_lea.sflag [#allocation4], 1
    %17 = vsyncpa %s16, 0
    %18 = vsyncpa [#allocation9], 0
    %s19 = scalar_lea.sflag [#allocation9], 1
    %20 = vsyncpa %s19, 0
    loop: start=0, step=1, limit=4
    $region2: #{tpu_custom_call.1} parent=1 // loop_pre_header
      _
    $region3: #{tpu_custom_call.1} parent=1 // loop_header
      %s22 = sphi 0, %s26
      %p23 = scmp.ge.s32.totalorder %s22, 4
      %s32 = sphi 0, %s34
      %s35 = sphi 0, %s32
      %s36 = sphi 0, %s35
      %s52 = sphi 0, %s36
      %s58 = sphi 0, %s60
      %s61 = sphi 0, %s58
      %s62 = sphi 0, %s61
      %s78 = sphi 0, %s62
      %s84 = sphi 0, %s86
      %s87 = sphi 0, %s84
      %s88 = sphi 0, %s87
      %s104 = sphi 0, %s88
      %s110 = sphi 0, %s112
      %s113 = sphi 0, %s110
      %s114 = sphi 0, %s113
      %s130 = sphi 0, %s114
    $region4: #{tpu_custom_call.1} parent=1 // loop_header_branch
      %25 = sbr.rel (%p23) target = $region8
    $region5: #{tpu_custom_call.1} parent=1 // loop_body
      %s27 = ssub.s32 %s22, 1
      %s28 = ssub.s32 %s22, 2
      %s29 = sadd.s32 %s22, 1
      %s30 = ssub.s32 %s22, %s29
      %p31 = scmp.eq.s32.totalorder %s30, 0
      %s33 = sadd.s32 %s32, 1
      %s34 = scalar_select %p31, %s32, %s33
      %p37 = pneg %p31
      %p38 = scmp.eq.s32.totalorder %s22, 1
      %p39 = por %p37, %p38
      %p40 = scmp.ne.s32.totalorder %s32, %s35
      %p41 = scmp.eq.s32.totalorder %s22, 0
      %p42 = por %p40, %p41
      %p43 = scmp.ne.s32.totalorder %s32, %s35
      %p44 = scmp.eq.s32.totalorder %s27, 1
      %p45 = por %p43, %p44
      %p46 = scmp.ne.s32.totalorder %s35, %s36
      %p47 = scmp.eq.s32.totalorder %s27, 0
      %p48 = por %p46, %p47
      %p49 = scmp.ne.s32.totalorder %s35, %s36
      %p50 = scmp.eq.s32.totalorder %s28, 1
      %p51 = por %p49, %p50
      %p53 = scmp.ne.s32.totalorder %s36, %s52
      %p54 = scmp.eq.s32.totalorder %s28, 0
      %p55 = por %p53, %p54
      %s56 = ssub.s32 %s22, %s29
      %p57 = scmp.eq.s32.totalorder %s56, 0
      %s59 = sadd.s32 %s58, 1
      %s60 = scalar_select %p57, %s58, %s59
      %p63 = pneg %p57
      %p64 = scmp.eq.s32.totalorder %s22, 1
      %p65 = por %p63, %p64
      %p66 = scmp.ne.s32.totalorder %s58, %s61
      %p67 = scmp.eq.s32.totalorder %s22, 0
      %p68 = por %p66, %p67
      %p69 = scmp.ne.s32.totalorder %s58, %s61
      %p70 = scmp.eq.s32.totalorder %s27, 1
      %p71 = por %p69, %p70
      %p72 = scmp.ne.s32.totalorder %s61, %s62
      %p73 = scmp.eq.s32.totalorder %s27, 0
      %p74 = por %p72, %p73
      %p75 = scmp.ne.s32.totalorder %s61, %s62
      %p76 = scmp.eq.s32.totalorder %s28, 1
      %p77 = por %p75, %p76
      %p79 = scmp.ne.s32.totalorder %s62, %s78
      %p80 = scmp.eq.s32.totalorder %s28, 0
      %p81 = por %p79, %p80
      %s82 = ssub.s32 %s22, %s29
      %p83 = scmp.eq.s32.totalorder %s82, 0
      %s85 = sadd.s32 %s84, 1
      %s86 = scalar_select %p83, %s84, %s85
      %p89 = pneg %p83
      %p90 = scmp.eq.s32.totalorder %s22, 1
      %p91 = por %p89, %p90
      %p92 = scmp.ne.s32.totalorder %s84, %s87
      %p93 = scmp.eq.s32.totalorder %s22, 0
      %p94 = por %p92, %p93
      %p95 = scmp.ne.s32.totalorder %s84, %s87
      %p96 = scmp.eq.s32.totalorder %s27, 1
      %p97 = por %p95, %p96
      %p98 = scmp.ne.s32.totalorder %s87, %s88
      %p99 = scmp.eq.s32.totalorder %s27, 0
      %p100 = por %p98, %p99
      %p101 = scmp.ne.s32.totalorder %s87, %s88
      %p102 = scmp.eq.s32.totalorder %s28, 1
      %p103 = por %p101, %p102
      %p105 = scmp.ne.s32.totalorder %s88, %s104
      %p106 = scmp.eq.s32.totalorder %s28, 0
      %p107 = por %p105, %p106
      %s108 = ssub.s32 %s22, %s29
      %p109 = scmp.eq.s32.totalorder %s108, 0
      %s111 = sadd.s32 %s110, 1
      %s112 = scalar_select %p109, %s110, %s111
      %p115 = pneg %p109
      %p116 = scmp.eq.s32.totalorder %s22, 1
      %p117 = por %p115, %p116
      %p118 = scmp.ne.s32.totalorder %s110, %s113
      %p119 = scmp.eq.s32.totalorder %s22, 0
      %p120 = por %p118, %p119
      %p121 = scmp.ne.s32.totalorder %s110, %s113
      %p122 = scmp.eq.s32.totalorder %s27, 1
      %p123 = por %p121, %p122
      %p124 = scmp.ne.s32.totalorder %s113, %s114
      %p125 = scmp.eq.s32.totalorder %s27, 0
      %p126 = por %p124, %p125
      %p127 = scmp.ne.s32.totalorder %s113, %s114
      %p128 = scmp.eq.s32.totalorder %s28, 1
      %p129 = por %p127, %p128
      %p131 = scmp.ne.s32.totalorder %s114, %s130
      %p132 = scmp.eq.s32.totalorder %s28, 0
      %p133 = por %p131, %p132
      %p134 = scmp.le.s32.totalorder 1, %s22
      %p135 = scmp.lt.s32.totalorder %s22, 3
      %p136 = pnand %p134, %p135
      %p137 = pneg %p136
      // Predicated region
      $region9: #{tpu_custom_call.1} parent=5 // pred_check
        _
      $region10: #{tpu_custom_call.1} parent=5 // pred_check_branch
        %139 = sbr.rel (%p136) target = $region12
      $region11: #{tpu_custom_call.1} parent=5 // pred_region
        %s140 = ssub.s32 %s22, 1
      $region12: #{tpu_custom_call.1} parent=5 // pred_fallthru
        _
      %p141 = scmp.lt.s32.totalorder %s22, 2
      // Predicated region
      $region13: #{tpu_custom_call.1} parent=5 // pred_check
        %p142 = pneg %p141
      $region14: #{tpu_custom_call.1} parent=5 // pred_check_branch
        %144 = sbr.rel (%p142) target = $region16
      $region15: #{tpu_custom_call.1} parent=5 // pred_region
        // Predicated region
        $region17: #{tpu_custom_call.1} parent=15 // pred_check
          %p145 = pneg %p42
        $region18: #{tpu_custom_call.1} parent=15 // pred_check_branch
          %147 = sbr.rel (%p145) target = $region20
        $region19: #{tpu_custom_call.1} parent=15 // pred_region
          %s148 = sand.u32 %s32, 1
          %s149 = scalar_lea.sflag [#allocation3], %s148
          %s150 = sand.u32 %s32, 1
          %s151 = smul.addr %s150, 64
          %s152 = scalar_lea.vmem [#allocation2], %s151
          %s154 = ssub.s32 1024, 1024
          %155 = vsyncadd %s149, %s154
          %s156 = smul.addr %s22, 8
          %s157 = smul.addr %s156, 128
          %s158 = scalar_lea.hbm %s0, %s157
          %s160 = sshll.u32 %s152, 4
          %s161 = int_to_ptr.vmem [resolvable:$true] %s160
          %163 = dma.hbm_to_vmem [thread:$0]  %s158, 1024, %s161, %s149
        $region20: #{tpu_custom_call.1} parent=15 // pred_fallthru
          _
        // Predicated region
        $region21: #{tpu_custom_call.1} parent=15 // pred_check
          %p164 = pneg %p68
        $region22: #{tpu_custom_call.1} parent=15 // pred_check_branch
          %166 = sbr.rel (%p164) target = $region24
        $region23: #{tpu_custom_call.1} parent=15 // pred_region
          %s167 = sand.u32 %s58, 1
          %s168 = scalar_lea.sflag [#allocation6], %s167
          %s169 = sand.u32 %s58, 1
          %s170 = smul.addr %s169, 64
          %s171 = scalar_lea.vmem [#allocation5], %s170
          %s173 = ssub.s32 1024, 1024
          %174 = vsyncadd %s168, %s173
          %s175 = smul.addr %s22, 8
          %s176 = smul.addr %s175, 128
          %s177 = scalar_lea.hbm %s1, %s176
          %s179 = sshll.u32 %s171, 4
          %s180 = int_to_ptr.vmem [resolvable:$true] %s179
          %182 = dma.hbm_to_vmem [thread:$0]  %s177, 1024, %s180, %s168
        $region24: #{tpu_custom_call.1} parent=15 // pred_fallthru
          _
      $region16: #{tpu_custom_call.1} parent=5 // pred_fallthru
        _
      %p183 = scmp.le.s32.totalorder 1, %s22
      %p184 = scmp.lt.s32.totalorder %s22, 3
      %p185 = pnand %p183, %p184
      %p186 = pneg %p185
      // Predicated region
      $region25: #{tpu_custom_call.1} parent=5 // pred_check
        _
      $region26: #{tpu_custom_call.1} parent=5 // pred_check_branch
        %188 = sbr.rel (%p185) target = $region28
      $region27: #{tpu_custom_call.1} parent=5 // pred_region
        %s189 = ssub.s32 %s22, 1
        %s190 = sand.u32 %s35, 1
        %s191 = scalar_lea.sflag [#allocation3], %s190
        %s192 = sand.u32 %s35, 1
        %s193 = smul.addr %s192, 64
        %s194 = scalar_lea.vmem [#allocation2], %s193
        // Predicated region
        $region29: #{tpu_custom_call.1} parent=27 // pred_check
          %p195 = pneg %p48
        $region30: #{tpu_custom_call.1} parent=27 // pred_check_branch
          %197 = sbr.rel (%p195) target = $region32
        $region31: #{tpu_custom_call.1} parent=27 // pred_region
          %198 = dma.done %s191, 1024
        $region32: #{tpu_custom_call.1} parent=27 // pred_fallthru
          _
        %s199 = sand.u32 %s61, 1
        %s200 = scalar_lea.sflag [#allocation6], %s199
        %s201 = sand.u32 %s61, 1
        %s202 = smul.addr %s201, 64
        %s203 = scalar_lea.vmem [#allocation5], %s202
        // Predicated region
        $region33: #{tpu_custom_call.1} parent=27 // pred_check
          %p204 = pneg %p74
        $region34: #{tpu_custom_call.1} parent=27 // pred_check_branch
          %206 = sbr.rel (%p204) target = $region36
        $region35: #{tpu_custom_call.1} parent=27 // pred_region
          %207 = dma.done %s200, 1024
        $region36: #{tpu_custom_call.1} parent=27 // pred_fallthru
          _
        %s208 = sand.u32 %s35, 1
        %s209 = scalar_lea.sflag [#allocation3], %s208
        %s210 = sand.u32 %s35, 1
        %s211 = smul.addr %s210, 64
        %s212 = scalar_lea.vmem [#allocation2], %s211
        %p213 = pneg %p48
        %p214 = pneg %p45
        %s215 = sand.u32 %s61, 1
        %s216 = scalar_lea.sflag [#allocation6], %s215
        %s217 = sand.u32 %s61, 1
        %s218 = smul.addr %s217, 64
        %s219 = scalar_lea.vmem [#allocation5], %s218
        %p220 = pneg %p74
        %p221 = pneg %p71
        %p222 = pneg %p100
        %p223 = pneg %p97
        %s224 = sand.u32 %s87, 1
        %s225 = scalar_lea.sflag [#allocation4], %s224
        %s226 = sand.u32 %s87, 1
        %s227 = smul.addr %s226, 64
        %s228 = scalar_lea.vmem [#allocation7], %s227
        %p229 = pneg %p126
        %p230 = pneg %p123
        %s231 = sand.u32 %s113, 1
        %s232 = scalar_lea.sflag [#allocation9], %s231
        %s233 = sand.u32 %s113, 1
        %s234 = smul.addr %s233, 64
        %s235 = scalar_lea.vmem [#allocation8], %s234
        %v236 = vld [vmem:[%s194] sm:$0xff]
        %v237 = vld [vmem:[%s194 + $0x8] sm:$0xff]
        %v238 = vld [vmem:[%s194 + $0x10] sm:$0xff]
        %v239 = vld [vmem:[%s194 + $0x18] sm:$0xff]
        %v240 = vld [vmem:[%s194 + $0x20] sm:$0xff]
        %v241 = vld [vmem:[%s194 + $0x28] sm:$0xff]
        %v242 = vld [vmem:[%s194 + $0x30] sm:$0xff]
        %v243 = vld [vmem:[%s194 + $0x38] sm:$0xff]
        %v244 = vld [vmem:[%s203] sm:$0xff]
        %v245 = vld [vmem:[%s203 + $0x8] sm:$0xff]
        %v246 = vld [vmem:[%s203 + $0x10] sm:$0xff]
        %v247 = vld [vmem:[%s203 + $0x18] sm:$0xff]
        %v248 = vld [vmem:[%s203 + $0x20] sm:$0xff]
        %v249 = vld [vmem:[%s203 + $0x28] sm:$0xff]
        %v250 = vld [vmem:[%s203 + $0x30] sm:$0xff]
        %v251 = vld [vmem:[%s203 + $0x38] sm:$0xff]
        %vm252 = vcmp.ge.f32.partialorder %v236, 0.0
        %vm253 = vcmp.ge.f32.partialorder %v237, 0.0
        %vm254 = vcmp.ge.f32.partialorder %v238, 0.0
        %vm255 = vcmp.ge.f32.partialorder %v239, 0.0
        %vm256 = vcmp.ge.f32.partialorder %v240, 0.0
        %vm257 = vcmp.ge.f32.partialorder %v241, 0.0
        %vm258 = vcmp.ge.f32.partialorder %v242, 0.0
        %vm259 = vcmp.ge.f32.partialorder %v243, 0.0
        %v260 = vsel %vm252, 1, 0
        %v261 = vsel %vm253, 1, 0
        %v262 = vsel %vm254, 1, 0
        %v263 = vsel %vm255, 1, 0
        %v264 = vsel %vm256, 1, 0
        %v265 = vsel %vm257, 1, 0
        %v266 = vsel %vm258, 1, 0
        %v267 = vsel %vm259, 1, 0
        %v268 = vcvt.s32.f32 %v260
        %v269 = vcvt.s32.f32 %v261
        %v270 = vcvt.s32.f32 %v262
        %v271 = vcvt.s32.f32 %v263
        %v272 = vcvt.s32.f32 %v264
        %v273 = vcvt.s32.f32 %v265
        %v274 = vcvt.s32.f32 %v266
        %v275 = vcvt.s32.f32 %v267
        %v276 = vmul.f32 %v268, %v236
        %v277 = vmul.f32 %v269, %v237
        %v278 = vmul.f32 %v270, %v238
        %v279 = vmul.f32 %v271, %v239
        %v280 = vmul.f32 %v272, %v240
        %v281 = vmul.f32 %v273, %v241
        %v282 = vmul.f32 %v274, %v242
        %v283 = vmul.f32 %v275, %v243
        %284 = vst [vmem:[%s228] sm:$0xff] %v276
        %285 = vst [vmem:[%s228 + $0x8] sm:$0xff] %v277
        %286 = vst [vmem:[%s228 + $0x10] sm:$0xff] %v278
        %287 = vst [vmem:[%s228 + $0x18] sm:$0xff] %v279
        %288 = vst [vmem:[%s228 + $0x20] sm:$0xff] %v280
        %289 = vst [vmem:[%s228 + $0x28] sm:$0xff] %v281
        %290 = vst [vmem:[%s228 + $0x30] sm:$0xff] %v282
        %291 = vst [vmem:[%s228 + $0x38] sm:$0xff] %v283
        %v292 = vmul.f32 %v268, %v244
        %v293 = vmul.f32 %v269, %v245
        %v294 = vmul.f32 %v270, %v246
        %v295 = vmul.f32 %v271, %v247
        %v296 = vmul.f32 %v272, %v248
        %v297 = vmul.f32 %v273, %v249
        %v298 = vmul.f32 %v274, %v250
        %v299 = vmul.f32 %v275, %v251
        %300 = vst [vmem:[%s235] sm:$0xff] %v292
        %301 = vst [vmem:[%s235 + $0x8] sm:$0xff] %v293
        %302 = vst [vmem:[%s235 + $0x10] sm:$0xff] %v294
        %303 = vst [vmem:[%s235 + $0x18] sm:$0xff] %v295
        %304 = vst [vmem:[%s235 + $0x20] sm:$0xff] %v296
        %305 = vst [vmem:[%s235 + $0x28] sm:$0xff] %v297
        %306 = vst [vmem:[%s235 + $0x30] sm:$0xff] %v298
        %307 = vst [vmem:[%s235 + $0x38] sm:$0xff] %v299
        %s308 = sand.u32 %s87, 1
        %s309 = scalar_lea.sflag [#allocation4], %s308
        %s310 = sand.u32 %s87, 1
        %s311 = smul.addr %s310, 64
        %s312 = scalar_lea.vmem [#allocation7], %s311
        %s313 = sand.u32 %s113, 1
        %s314 = scalar_lea.sflag [#allocation9], %s313
        %s315 = sand.u32 %s113, 1
        %s316 = smul.addr %s315, 64
        %s317 = scalar_lea.vmem [#allocation8], %s316
        // Predicated region
        $region37: #{tpu_custom_call.1} parent=27 // pred_check
          %p318 = pneg %p97
        $region38: #{tpu_custom_call.1} parent=27 // pred_check_branch
          %320 = sbr.rel (%p318) target = $region40
        $region39: #{tpu_custom_call.1} parent=27 // pred_region
          %s322 = ssub.s32 1024, 1024
          %323 = vsyncadd %s309, %s322
          %s324 = smul.addr %s27, 8
          %s325 = smul.addr %s324, 128
          %s326 = scalar_lea.hbm %s2, %s325
          %s328 = sshll.u32 %s312, 4
          %s329 = int_to_ptr.vmem [resolvable:$true] %s328
          %331 = dma.vmem_to_hbm [thread:$0]  %s329, 1024, %s326, %s309
        $region40: #{tpu_custom_call.1} parent=27 // pred_fallthru
          _
        // Predicated region
        $region41: #{tpu_custom_call.1} parent=27 // pred_check
          %p332 = pneg %p123
        $region42: #{tpu_custom_call.1} parent=27 // pred_check_branch
          %334 = sbr.rel (%p332) target = $region44
        $region43: #{tpu_custom_call.1} parent=27 // pred_region
          %s336 = ssub.s32 1024, 1024
          %337 = vsyncadd %s314, %s336
          %s338 = smul.addr %s27, 8
          %s339 = smul.addr %s338, 128
          %s340 = scalar_lea.hbm %s3, %s339
          %s342 = sshll.u32 %s317, 4
          %s343 = int_to_ptr.vmem [resolvable:$true] %s342
          %345 = dma.vmem_to_hbm [thread:$0]  %s343, 1024, %s340, %s314
        $region44: #{tpu_custom_call.1} parent=27 // pred_fallthru
          _
      $region28: #{tpu_custom_call.1} parent=5 // pred_fallthru
        _
      %p346 = scmp.le.s32.totalorder 2, %s22
      // Predicated region
      $region45: #{tpu_custom_call.1} parent=5 // pred_check
        %p347 = pneg %p346
      $region46: #{tpu_custom_call.1} parent=5 // pred_check_branch
        %349 = sbr.rel (%p347) target = $region48
      $region47: #{tpu_custom_call.1} parent=5 // pred_region
        %s350 = ssub.s32 %s22, 2
        // Predicated region
        $region49: #{tpu_custom_call.1} parent=47 // pred_check
          %p351 = pneg %p103
        $region50: #{tpu_custom_call.1} parent=47 // pred_check_branch
          %353 = sbr.rel (%p351) target = $region52
        $region51: #{tpu_custom_call.1} parent=47 // pred_region
          %s354 = sand.u32 %s88, 1
          %s355 = scalar_lea.sflag [#allocation4], %s354
          %s356 = sand.u32 %s88, 1
          %s357 = smul.addr %s356, 64
          %s358 = scalar_lea.vmem [#allocation7], %s357
          %359 = dma.done %s355, 1024
        $region52: #{tpu_custom_call.1} parent=47 // pred_fallthru
          _
        // Predicated region
        $region53: #{tpu_custom_call.1} parent=47 // pred_check
          %p360 = pneg %p129
        $region54: #{tpu_custom_call.1} parent=47 // pred_check_branch
          %362 = sbr.rel (%p360) target = $region56
        $region55: #{tpu_custom_call.1} parent=47 // pred_region
          %s363 = sand.u32 %s114, 1
          %s364 = scalar_lea.sflag [#allocation9], %s363
          %s365 = sand.u32 %s114, 1
          %s366 = smul.addr %s365, 64
          %s367 = scalar_lea.vmem [#allocation8], %s366
          %368 = dma.done %s364, 1024
        $region56: #{tpu_custom_call.1} parent=47 // pred_fallthru
          _
      $region48: #{tpu_custom_call.1} parent=5 // pred_fallthru
        _
    $region6: #{tpu_custom_call.1} parent=1 // loop_footer
      %s26 = sadd.s32 1, %s22
    $region7: #{tpu_custom_call.1} parent=1 // loop_footer_branch
      %21 = sbr.rel target = $region3
    $region8: #{tpu_custom_call.1} parent=1 // loop_exit
      _
    %369 = vsyncpa [#allocation3], 1
    %s370 = scalar_lea.sflag [#allocation3], 1
    %371 = vsyncpa %s370, 1
    %372 = vsyncpa [#allocation6], 1
    %s373 = scalar_lea.sflag [#allocation6], 1
    %374 = vsyncpa %s373, 1
    %375 = vsyncpa [#allocation4], 1
    %s376 = scalar_lea.sflag [#allocation4], 1
    %377 = vsyncpa %s376, 1
    %378 = vsyncpa [#allocation9], 1
    %s379 = scalar_lea.sflag [#allocation9], 1
    %380 = vsyncpa %s379, 1

</llo_original>
